<compile_context>
chip_gen: v6e
topology: v6e:2x2x1
jax: 0.10.0
libtpu: 0.0.40
codegen_flags: <defaults>
</compile_context>

<pallas_src>
import functools
import math

import jax
import jax.numpy as jnp
from jax.experimental import pallas as pl
from jax.experimental.pallas import tpu as pltpu


def _cdiv(a, b):
    return -(-a // b)


# ----------------------------- Pallas kernel --------------------------------
def _patch_embed_kernel(patches_ref, w_ref, pe_ref, o_ref):
    # patches_ref: (tm, gK)    bf16  -- tm = bb * Npack packed rows (bb whole batches)
    # w_ref:       (gK, Ep)    bf16  -- block-diagonal lane-packed projection, resident
    # pe_ref:      (Npack, Ep) f32   -- lane-packed sinusoidal PE + conv bias, resident
    # o_ref:       (tm, Ep)    bf16  -- lane-dense packed output tile
    tm, ep = o_ref.shape
    npack = pe_ref.shape[0]
    bb = tm // npack                                             # static Python int
    proj = jnp.dot(patches_ref[...], w_ref[...],
                   preferred_element_type=jnp.float32)           # MXU, f32 accumulate
    out = proj.reshape(bb, npack, ep) + pe_ref[...][None, :, :]  # VPU add in f32 (v5e-safe)
    o_ref[...] = out.reshape(tm, ep).astype(o_ref.dtype)         # bf16 store: half the bytes


# ------------------------------- wrapper -------------------------------------
@functools.partial(jax.jit, static_argnames=("patch_h", "patch_w"))
def patch_embedding_forward(x, conv_w, conv_b, pe, patch_h, patch_w):
    """x: (B,Cin,H,W) f32; conv_w: (E,Cin,ph,pw); conv_b: (E,); pe: (max_len>=N, E).

    Returns (B, N, E) in bf16 (f32 accumulation / f32 PE add, bf16 store).
    """
    B, Cin, H, W = x.shape
    E = conv_w.shape[0]
    nh, nw = H // patch_h, W // patch_w
    N = nh * nw
    K = Cin * patch_h * patch_w

    # ---- lane-packing factor g: pack g patches into one 128-lane output row --------
    if E % 128 == 0:
        g = 1                                    # already lane-dense
    elif 128 % E == 0 and N % (128 // E) == 0:
        g = 128 // E                             # e.g. E=32 -> g=4 -> 128-lane rows
    else:
        g = 1                                    # fallback: pad lanes + slice afterwards
    Ep = g * E
    Ep_pad = _cdiv(Ep, 128) * 128                # == Ep on the packed / E%128==0 paths
    gK = g * K
    Npack = N // g                               # packed rows per batch element

    # ---- patch extraction (pure data movement; Conv2d stride == kernel) ------------
    # (B,Cin,nh,ph,nw,pw) -> (B,nh,nw,Cin,ph,pw) -> (B*Npack, g*K); K order (Cin,ph,pw)
    # matches conv_w.reshape(E, K).
    # TODO(synk): fold this rearrange + bf16 cast into the kernel (idle XLU) for large
    # Cin / patch sizes; at these shapes XLA fuses the transpose with the bf16 convert
    # into a single pass ahead of the Pallas call.
    patches = x.reshape(B, Cin, nh, patch_h, nw, patch_w)
    patches = patches.transpose(0, 2, 4, 1, 3, 5)
    patches = patches.reshape(B * Npack, gK).astype(jnp.bfloat16)

    # ---- block-diagonal lane-packed projection weight (g*K, Ep_pad), bf16 ----------
    w_mat = conv_w.reshape(E, K).T.astype(jnp.float32)            # (K, E)
    if g == 1:
        w_block = w_mat
    else:
        eye = jnp.eye(g, dtype=jnp.float32)
        w_block = (eye[:, None, :, None] * w_mat[None, :, None, :]).reshape(gK, Ep)
    w_block = w_block.astype(jnp.bfloat16)
    if Ep_pad > Ep:
        w_block = jnp.pad(w_block, ((0, 0), (0, Ep_pad - Ep)))

    # ---- PE table: defensive [:N] slice, fold conv bias, lane-pack, keep f32 -------
    pe_b = pe[:N].astype(jnp.float32) + conv_b[None, :].astype(jnp.float32)   # (N, E)
    pe_pack = pe_b.reshape(Npack, Ep)
    if Ep_pad > Ep:
        pe_pack = jnp.pad(pe_pack, ((0, 0), (0, Ep_pad - Ep)))

    # ---- tiling: whole batch elements per tile, sublane aligned, >=2 tiles ---------
    SUB = 16                                     # bf16 sublane quantum for packed rows
    q = SUB // math.gcd(Npack, SUB)              # min bb such that bb*Npack % SUB == 0
    lanes_in = _cdiv(gK, 128) * 128              # VMEM lane footprint of the LHS tile
    # Double-buffered streamed bytes per batch element (bf16 input + bf16 output).
    bytes_per_bb = Npack * (2 * lanes_in * 2 + 2 * Ep_pad * 2)
    vmem_budget = 8 * 1024 * 1024                # stays well under v5e 16 MiB / v7x 32 MiB
    bb_vmem = max(1, vmem_budget // max(1, bytes_per_bb))
    tm_target = 4096                             # packed rows/step: amortize ~0.35us/step
    bb_target = max(1, min(tm_target // max(1, Npack), bb_vmem))

    if B < 2 * q:
        bb = B                                   # single tile == full array (always legal)
    else:
        num_tiles = max(2, _cdiv(B, bb_target))  # >=2 tiles: v7x megacore uses both TCs
        bb = _cdiv(B, num_tiles)
        bb = _cdiv(bb, q) * q                    # round up to the sublane quantum
    num_tiles = _cdiv(B, bb)
    B_pad = num_tiles * bb
    if B_pad > B:                                # ragged batch: pad whole batch elements
        patches = jnp.pad(patches, ((0, (B_pad - B) * Npack), (0, 0)))
    tm = bb * Npack

    out_pack = pl.pallas_call(
        _patch_embed_kernel,
        out_shape=jax.ShapeDtypeStruct((B_pad * Npack, Ep_pad), jnp.bfloat16),
        grid_spec=pltpu.PrefetchScalarGridSpec(
            num_scalar_prefetch=0,
            grid=(num_tiles,),
            in_specs=[
                pl.BlockSpec((tm, gK), lambda i: (i, 0)),        # streamed patch rows
                # Resident operands (constant index_map -> DMA'd once).  At realistic
                # d_model add pipeline_mode=pl.Buffered(1) to drop the second buffer;
                # here W+PE total <20 KiB so the default double-buffer is negligible.
                pl.BlockSpec((gK, Ep_pad), lambda i: (0, 0)),    # packed projection W
                pl.BlockSpec((Npack, Ep_pad), lambda i: (0, 0)), # packed PE + bias
            ],
            out_specs=pl.BlockSpec((tm, Ep_pad), lambda i: (i, 0)),
        ),
        compiler_params=pltpu.CompilerParams(
            dimension_semantics=("parallel",),   # v7x: the two TCs split the row tiles
        ),
    )(patches, w_block, pe_pack)

    # ---- unpack: on the packed path this is a free row-major view (no copy) --------
    if Ep_pad > Ep:                              # fallback only (E not dividing 128)
        out_pack = out_pack[:, :Ep]
    if B_pad > B:                                # ragged-batch padding only
        out_pack = out_pack[: B * Npack]
    return out_pack.reshape(B, N, E)


# ---------------------- parameter / PE construction --------------------------
def make_sinusoidal_pe(max_len, d_model):
    # Matches PositionalEncoding.__init__ exactly.
    position = jnp.arange(0, max_len, dtype=jnp.float32)[:, None]            # (L, 1)
    div_term = jnp.exp(
        jnp.arange(0, d_model, 2, dtype=jnp.float32) * -(math.log(10000.0) / d_model)
    )                                                                        # (d/2,)
    pe = jnp.zeros((max_len, d_model), dtype=jnp.float32)
    pe = pe.at[:, 0::2].set(jnp.sin(position * div_term))
    pe = pe.at[:, 1::2].set(jnp.cos(position * div_term))
    return pe


def reference_forward(x, conv_w, conv_b, pe, ph, pw):
    # Pure-JAX f32 reference (lax conv) for correctness check.
    y = jax.lax.conv_general_dilated(
        x, conv_w, window_strides=(ph, pw), padding="VALID",
        dimension_numbers=("NCHW", "OIHW", "NCHW"),
    ) + conv_b[None, :, None, None]
    B, E, nh, nw = y.shape
    y = y.transpose(0, 2, 3, 1).reshape(B, nh * nw, E)        # 'b e h w -> b (h w) e'
    return y + pe[None, :nh * nw, :]


if __name__ == "__main__":
    # Config consistent with the module defaults: in_channels=1, patchsize=4,
    # d_model(emb_size)=32, img_size1(C)=16, img_size2(T)=16; small batch=8 so the
    # grid has 2 parallel tiles (exercises the v7x megacore path).
    B, Cin, H, W = 8, 1, 16, 16
    ph = pw = 4
    E = 32
    N = (H // ph) * (W // pw)        # 16 patches
    max_len = N                      # PositionalEncoding(max_len = C*T/(ph*pw)) == N

    key = jax.random.PRNGKey(0)
    kx, kw, kb = jax.random.split(key, 3)
    x = jax.random.normal(kx, (B, Cin, H, W), dtype=jnp.float32)
    conv_w = jax.random.normal(kw, (E, Cin, ph, pw), dtype=jnp.float32) * 0.1
    conv_b = jax.random.normal(kb, (E,), dtype=jnp.float32) * 0.1
    pe = make_sinusoidal_pe(max_len, E)

    # NOTE: cls_token and self.positions are unused by the PyTorch forward -> omitted.
    # Dropout inside PositionalEncoding is identity in eval mode.

    out = patch_embedding_forward(x, conv_w, conv_b, pe, ph, pw)
    out = jax.block_until_ready(out)

    ref = reference_forward(x, conv_w, conv_b, pe, ph, pw)
    assert out.shape == (B, N, E), out.shape
    err = float(jnp.max(jnp.abs(out.astype(jnp.float32) - ref)))
    # Tolerance covers bf16 matmul operands and the bf16 output store (accumulation and
    # the PE add are f32).
    assert err < 4e-2, f"mismatch vs reference: {err}"

    print("KERNEL_OK")
</pallas_src>

<mosaic_0001>
module attributes {stable_mosaic.version = 11 : i64} {
  func.func @_patch_embed_kernel(%arg0: i32, %arg1: memref<16x64xbf16, #tpu.memory_space<vmem>>, %arg2: memref<64x128xbf16, #tpu.memory_space<vmem>>, %arg3: memref<4x128xf32, #tpu.memory_space<vmem>>, %arg4: memref<16x128xbf16, #tpu.memory_space<vmem>>) attributes {dimension_semantics = [#tpu.dimension_semantics<parallel>], iteration_bounds = array<i64: 2>, scalar_prefetch = 0 : i64, scratch_operands = 0 : i64, tpu.core_type = #tpu.core_type<tc>, window_params = [{transform_indices = @transform_0, window_bounds = array<i64: 16, 64>}, {pipeline_mode = #tpu.pipeline_mode<synchronous>, transform_indices = @transform_1, window_bounds = array<i64: 64, 128>}, {pipeline_mode = #tpu.pipeline_mode<synchronous>, transform_indices = @transform_2, window_bounds = array<i64: 4, 128>}, {transform_indices = @transform_3, window_bounds = array<i64: 16, 128>}]} {
    %c0 = arith.constant 0 : index
    %c0_0 = arith.constant 0 : index
    %0 = vector.load %arg1[%c0, %c0_0] : memref<16x64xbf16, #tpu.memory_space<vmem>>, vector<16x64xbf16>
    %c0_1 = arith.constant 0 : index
    %c0_2 = arith.constant 0 : index
    %1 = vector.load %arg2[%c0_1, %c0_2] : memref<64x128xbf16, #tpu.memory_space<vmem>>, vector<64x128xbf16>
    %cst = arith.constant dense<0.000000e+00> : vector<16x128xf32>
    %2 = tpu.matmul %0, %1, %cst {dimension_numbers = #tpu.dot_dimension_numbers<[1], [0], [0], [1], [0, 0, 1, 1], [], []>} : vector<16x64xbf16>, vector<64x128xbf16>, vector<16x128xf32> -> vector<16x128xf32>
    %3 = vector.shape_cast %2 : vector<16x128xf32> to vector<4x4x128xf32>
    %c0_3 = arith.constant 0 : index
    %c0_4 = arith.constant 0 : index
    %4 = vector.load %arg3[%c0_3, %c0_4] : memref<4x128xf32, #tpu.memory_space<vmem>>, vector<4x128xf32>
    %5 = vector.shape_cast %4 : vector<4x128xf32> to vector<1x4x128xf32>
    %6 = vector.broadcast %5 : vector<1x4x128xf32> to vector<4x4x128xf32>
    %7 = arith.addf %3, %6 : vector<4x4x128xf32>
    %8 = vector.shape_cast %7 : vector<4x4x128xf32> to vector<16x128xf32>
    %9 = arith.truncf %8 : vector<16x128xf32> to vector<16x128xbf16>
    %c0_5 = arith.constant 0 : index
    %c0_6 = arith.constant 0 : index
    %10 = vector.load %arg4[%c0_5, %c0_6] : memref<16x128xbf16, #tpu.memory_space<vmem>>, vector<16x128xbf16>
    tpu.vector_store %arg4[%c0_5, %c0_6], %9 {strides = array<i32>} : memref<16x128xbf16, #tpu.memory_space<vmem>>, vector<16x128xbf16>,
    return
  }
  func.func @transform_0(%arg0: i32) -> (i32, i32) {
    %c0_i32 = arith.constant 0 : i32
    %c0_i32_0 = arith.constant 0 : i32
    return %arg0, %c0_i32 : i32, i32
  }
  func.func @transform_1(%arg0: i32) -> (i32, i32) {
    %c0_i32 = arith.constant 0 : i32
    %c0_i32_0 = arith.constant 0 : i32
    %c0_i32_1 = arith.constant 0 : i32
    return %c0_i32, %c0_i32_0 : i32, i32
  }
  func.func @transform_2(%arg0: i32) -> (i32, i32) {
    %c0_i32 = arith.constant 0 : i32
    %c0_i32_0 = arith.constant 0 : i32
    %c0_i32_1 = arith.constant 0 : i32
    return %c0_i32, %c0_i32_0 : i32, i32
  }
  func.func @transform_3(%arg0: i32) -> (i32, i32) {
    %c0_i32 = arith.constant 0 : i32
    %c0_i32_0 = arith.constant 0 : i32
    return %arg0, %c0_i32 : i32, i32
  }
}

</mosaic_0001>

<llo_original>
// kernel: patch_embedding_forward.1
$region0: #{patch_embedding_forward.1}
  #allocation0 [shape = 'u32[]', space=smem, size = 0x4, offset = 0x4, fixed_abs, tag = 'smem constant byte address 0x4 - core index']
  #allocation1 [shape = 'u32[144,128]{1,0:T(1,128)}', space=vmem, size = 0x12000, scoped, tag = 'internal scratch']
  %s0 = inlined_call_operand.vmem [shape: bf16[32,64], index: 0, kind: input, shape index: {}]
  %s1 = inlined_call_operand.vmem [shape: bf16[64,128], index: 1, kind: input, shape index: {}]
  %s2 = inlined_call_operand.vmem [shape: f32[4,128], index: 2, kind: input, shape index: {}]
  %s3 = inlined_call_operand.vmem [shape: bf16[32,128], index: 3, kind: output, shape index: {}]
  %s4 = sld [smem:[#allocation0]]
  $region45: #{patch_embedding_forward.1} parent=0
    _
  %s6 = ssub.s32 1, %s4
  %s7 = scalar_select 0, %s6, %s4
  loop: start=0, step=1, limit=4
  $region2: #{patch_embedding_forward.1} parent=0 // loop_pre_header
    _
  $region3: #{patch_embedding_forward.1} parent=0 // loop_header
    %s9 = sphi 0, %s13
    %p10 = scmp.ge.s32.totalorder %s9, 4
    %s19 = sphi 0, %s21
    %s22 = sphi 0, %s19
    %s23 = sphi 0, %s22
    %s39 = sphi 0, %s23
    %s43 = sphi 0, %s43
    %s45 = sphi 0, %s43
    %s46 = sphi 0, %s45
    %s60 = sphi 0, %s46
    %s64 = sphi 0, %s64
    %s66 = sphi 0, %s64
    %s67 = sphi 0, %s66
    %s81 = sphi 0, %s67
    %s87 = sphi 0, %s89
    %s90 = sphi 0, %s87
    %s91 = sphi 0, %s90
    %s107 = sphi 0, %s91
  $region4: #{patch_embedding_forward.1} parent=0 // loop_header_branch
    %12 = sbr.rel (%p10) target = $region8
  $region5: #{patch_embedding_forward.1} parent=0 // loop_body
    %s14 = ssub.s32 %s9, 1
    %s15 = ssub.s32 %s9, 2
    %s16 = sadd.s32 %s9, 1
    %s17 = ssub.s32 %s9, %s16
    %p18 = scmp.eq.s32.totalorder %s17, 0
    %s20 = sadd.s32 %s19, 1
    %s21 = scalar_select %p18, %s19, %s20
    %p24 = pneg %p18
    %p25 = scmp.eq.s32.totalorder %s9, 1
    %p26 = por %p24, %p25
    %p27 = scmp.ne.s32.totalorder %s19, %s22
    %p28 = scmp.eq.s32.totalorder %s9, 0
    %p29 = por %p27, %p28
    %p30 = scmp.ne.s32.totalorder %s19, %s22
    %p31 = scmp.eq.s32.totalorder %s14, 1
    %p32 = por %p30, %p31
    %p33 = scmp.ne.s32.totalorder %s22, %s23
    %p34 = scmp.eq.s32.totalorder %s14, 0
    %p35 = por %p33, %p34
    %p36 = scmp.ne.s32.totalorder %s22, %s23
    %p37 = scmp.eq.s32.totalorder %s15, 1
    %p38 = por %p36, %p37
    %p40 = scmp.ne.s32.totalorder %s23, %s39
    %p41 = scmp.eq.s32.totalorder %s15, 0
    %p42 = por %p40, %p41
    %s44 = sadd.s32 %s43, 1
    %p47 = scmp.eq.s32.totalorder %s9, 1
    %p48 = scmp.ne.s32.totalorder %s43, %s45
    %p49 = scmp.eq.s32.totalorder %s9, 0
    %p50 = por %p48, %p49
    %p51 = scmp.ne.s32.totalorder %s43, %s45
    %p52 = scmp.eq.s32.totalorder %s14, 1
    %p53 = por %p51, %p52
    %p54 = scmp.ne.s32.totalorder %s45, %s46
    %p55 = scmp.eq.s32.totalorder %s14, 0
    %p56 = por %p54, %p55
    %p57 = scmp.ne.s32.totalorder %s45, %s46
    %p58 = scmp.eq.s32.totalorder %s15, 1
    %p59 = por %p57, %p58
    %p61 = scmp.ne.s32.totalorder %s46, %s60
    %p62 = scmp.eq.s32.totalorder %s15, 0
    %p63 = por %p61, %p62
    %s65 = sadd.s32 %s64, 1
    %p68 = scmp.eq.s32.totalorder %s9, 1
    %p69 = scmp.ne.s32.totalorder %s64, %s66
    %p70 = scmp.eq.s32.totalorder %s9, 0
    %p71 = por %p69, %p70
    %p72 = scmp.ne.s32.totalorder %s64, %s66
    %p73 = scmp.eq.s32.totalorder %s14, 1
    %p74 = por %p72, %p73
    %p75 = scmp.ne.s32.totalorder %s66, %s67
    %p76 = scmp.eq.s32.totalorder %s14, 0
    %p77 = por %p75, %p76
    %p78 = scmp.ne.s32.totalorder %s66, %s67
    %p79 = scmp.eq.s32.totalorder %s15, 1
    %p80 = por %p78, %p79
    %p82 = scmp.ne.s32.totalorder %s67, %s81
    %p83 = scmp.eq.s32.totalorder %s15, 0
    %p84 = por %p82, %p83
    %s85 = ssub.s32 %s9, %s16
    %p86 = scmp.eq.s32.totalorder %s85, 0
    %s88 = sadd.s32 %s87, 1
    %s89 = scalar_select %p86, %s87, %s88
    %p92 = pneg %p86
    %p93 = scmp.eq.s32.totalorder %s9, 1
    %p94 = por %p92, %p93
    %p95 = scmp.ne.s32.totalorder %s87, %s90
    %p96 = scmp.eq.s32.totalorder %s9, 0
    %p97 = por %p95, %p96
    %p98 = scmp.ne.s32.totalorder %s87, %s90
    %p99 = scmp.eq.s32.totalorder %s14, 1
    %p100 = por %p98, %p99
    %p101 = scmp.ne.s32.totalorder %s90, %s91
    %p102 = scmp.eq.s32.totalorder %s14, 0
    %p103 = por %p101, %p102
    %p104 = scmp.ne.s32.totalorder %s90, %s91
    %p105 = scmp.eq.s32.totalorder %s15, 1
    %p106 = por %p104, %p105
    %p108 = scmp.ne.s32.totalorder %s91, %s107
    %p109 = scmp.eq.s32.totalorder %s15, 0
    %p110 = por %p108, %p109
    %p111 = scmp.le.s32.totalorder 1, %s9
    %p112 = scmp.lt.s32.totalorder %s9, 3
    %p113 = pnand %p111, %p112
    %p114 = pneg %p113
    // Predicated region
    $region9: #{patch_embedding_forward.1} parent=5 // pred_check
      _
    $region10: #{patch_embedding_forward.1} parent=5 // pred_check_branch
      %116 = sbr.rel (%p113) target = $region12
    $region11: #{patch_embedding_forward.1} parent=5 // pred_region
      %s117 = ssub.s32 %s9, 1
      // Predicated region
      $region13: #{patch_embedding_forward.1} parent=11 // pred_check
        %p118 = pneg %p56
      $region14: #{patch_embedding_forward.1} parent=11 // pred_check_branch
        %120 = sbr.rel (%p118) target = $region16
      $region15: #{patch_embedding_forward.1} parent=11 // pred_region
        _
      $region16: #{patch_embedding_forward.1} parent=11 // pred_fallthru
        _
      // Predicated region
      $region17: #{patch_embedding_forward.1} parent=11 // pred_check
        %p121 = pneg %p77
      $region18: #{patch_embedding_forward.1} parent=11 // pred_check_branch
        %123 = sbr.rel (%p121) target = $region20
      $region19: #{patch_embedding_forward.1} parent=11 // pred_region
        _
      $region20: #{patch_embedding_forward.1} parent=11 // pred_fallthru
        _
    $region12: #{patch_embedding_forward.1} parent=5 // pred_fallthru
      _
    %p124 = scmp.lt.s32.totalorder %s9, 2
    // Predicated region
    $region21: #{patch_embedding_forward.1} parent=5 // pred_check
      %p125 = pneg %p124
    $region22: #{patch_embedding_forward.1} parent=5 // pred_check_branch
      %127 = sbr.rel (%p125) target = $region24
    $region23: #{patch_embedding_forward.1} parent=5 // pred_region
      // Predicated region
      $region25: #{patch_embedding_forward.1} parent=23 // pred_check
        %p128 = pneg %p29
      $region26: #{patch_embedding_forward.1} parent=23 // pred_check_branch
        %130 = sbr.rel (%p128) target = $region28
      $region27: #{patch_embedding_forward.1} parent=23 // pred_region
        %s131 = smul.u32 2, %s9
        %p132 = scmp.lt.s32.totalorder %s131, 3
        %s133 = scalar_select %p132, %s131, 3
        %s134 = smul.addr %s133, 4
        %s135 = scalar_lea.vmem %s0, %s134
        %s136 = smul.u32 2, %s9
      $region28: #{patch_embedding_forward.1} parent=23 // pred_fallthru
        _
    $region24: #{patch_embedding_forward.1} parent=5 // pred_fallthru
      _
    %p137 = scmp.le.s32.totalorder 1, %s9
    %p138 = scmp.lt.s32.totalorder %s9, 3
    %p139 = pnand %p137, %p138
    %p140 = pneg %p139
    // Predicated region
    $region29: #{patch_embedding_forward.1} parent=5 // pred_check
      _
    $region30: #{patch_embedding_forward.1} parent=5 // pred_check_branch
      %142 = sbr.rel (%p139) target = $region32
    $region31: #{patch_embedding_forward.1} parent=5 // pred_region
      %s143 = ssub.s32 %s9, 1
      %s144 = smul.u32 2, %s14
      %p145 = scmp.lt.s32.totalorder %s144, 3
      %s146 = scalar_select %p145, %s144, 3
      %s147 = smul.addr %s146, 4
      %s148 = scalar_lea.vmem %s0, %s147
      %p149 = pneg %p35
      %p150 = pneg %p32
      %p151 = pneg %p56
      %p152 = pneg %p53
      %p153 = pneg %p77
      %p154 = pneg %p74
      %p155 = pneg %p103
      %p156 = pneg %p100
      %s157 = smul.u32 2, %s14
      %p158 = scmp.lt.s32.totalorder %s157, 3
      %s159 = scalar_select %p158, %s157, 3
      %s160 = smul.addr %s159, 4
      %s161 = scalar_lea.vmem %s3, %s160
      %s162 = smul.u32 2, %s14
      %p163 = scmp.lt.s32.totalorder %s162, 3
      %s164 = scalar_select %p163, %s162, 3
      %s165 = smul.addr %s164, 4
      %s166 = scalar_lea.vmem %s0, %s165
      %s167 = smul.u32 2, %s14
      %s168 = smul.u32 2, %s14
      %p169 = scmp.lt.s32.totalorder %s168, 3
      %s170 = scalar_select %p169, %s168, 3
      %s171 = smul.addr %s170, 4
      %s172 = scalar_lea.vmem %s3, %s171
      %s173 = smul.u32 2, %s14
      %v175 = vld [vmem:[%s166] sm:$0xf]
      %v176 = vld [vmem:[%s166 + $0x4] sm:$0xf]
      %v177 = vld [vmem:[%s1] sm:$0xf]
      %v178 = vld [vmem:[%s1 + $0x4] sm:$0xf]
      %v179 = vld [vmem:[%s1 + $0x8] sm:$0xf]
      %v180 = vld [vmem:[%s1 + $0xc] sm:$0xf]
      %v181 = vld [vmem:[%s1 + $0x10] sm:$0xf]
      %v182 = vld [vmem:[%s1 + $0x14] sm:$0xf]
      %v183 = vld [vmem:[%s1 + $0x18] sm:$0xf]
      %v184 = vld [vmem:[%s1 + $0x1c] sm:$0xf]
      %v187 = vunpack.c.l.b16 %v175
      %v188 = vunpack.c.l.b16 %v176
      %v189 = vpack.c.b16 %v188, %v187
      %v198 = vunpack.c.l.b16 %v177
      %v199 = vunpack.c.l.b16 %v178
      %v200 = vunpack.c.l.b16 %v179
      %v201 = vunpack.c.l.b16 %v180
      %v202 = vunpack.c.l.b16 %v181
      %v203 = vunpack.c.l.b16 %v182
      %v204 = vunpack.c.l.b16 %v183
      %v205 = vunpack.c.l.b16 %v184
      %v206 = vpack.c.b16 %v199, %v198
      %v207 = vpack.c.b16 %v201, %v200
      %v208 = vpack.c.b16 %v203, %v202
      %v209 = vpack.c.b16 %v205, %v204
      %vm214 = vcmask 523264
      %v216 = vsel %vm214, %v189, 0
      %218 = vmatprep.subr.bf16.mxu0 0
      %219 = vmatpush1.bf16.msra.mxu0 0
      %220 = vmatprep.subr.bf16.mxu0 0
      %221 = vmatpush1.bf16.msra.mxu0 0
      %222 = vmatprep.subr.bf16.mxu0 0
      %223 = vmatpush1.bf16.msra.mxu0 0
      %224 = vmatprep.subr.bf16.mxu0 0
      %225 = vmatpush1.bf16.msra.mxu0 0
      %226 = vmatprep.subr.bf16.mxu0 0
      %227 = vmatpush1.bf16.msra.mxu0 %v209
      %228 = vmatprep.subr.bf16.mxu0 0
      %229 = vmatpush1.bf16.msra.mxu0 %v208
      %230 = vmatprep.subr.bf16.mxu0 0
      %231 = vmatpush1.bf16.msra.mxu0 %v207
      %232 = vmatprep.subr.bf16.mxu0 0
      %233 = vmatpush1.bf16.msra.mxu0 %v206
      %234 = vmatprep.subr.bf16.mxu0 0
      %235 = vmatpush2.bf16.msra.mxu0 0
      %236 = vmatprep.subr.bf16.mxu0 0
      %237 = vmatpush2.bf16.msra.mxu0 0
      %238 = vmatprep.subr.bf16.mxu0 0
      %239 = vmatpush2.bf16.msra.mxu0 0
      %240 = vmatprep.subr.bf16.mxu0 0
      %241 = vmatpush2.bf16.msra.mxu0 0
      %242 = vmatprep.subr.bf16.mxu0 0
      %243 = vmatpush2.bf16.msra.mxu0 0
      %244 = vmatprep.subr.bf16.mxu0 0
      %245 = vmatpush2.bf16.msra.mxu0 0
      %246 = vmatprep.subr.bf16.mxu0 0
      %247 = vmatpush2.bf16.msra.mxu0 0
      %248 = vmatprep.subr.bf16.mxu0 0
      %249 = vmatpush2.bf16.msra.mxu0 0
      %250 = vmatprep.mubr.bf16.mxu0 0
      %251 = vmatmul.mubr.bf16.gmra.mxu0 %v216
      %v252 = vpop.f32.mrf.mxu0
      %v253 = vadd.f32 0.0, %v252
      %v254 = vpop.f32.mrf.mxu0
      %v255 = vpop.f32.mrf.mxu0
      %v256 = vadd.f32 0.0, %v255
      %v257 = vpop.f32.mrf.mxu0
      %258 = vdwg.mxu0
      %v261 = vcombine.high %v253, %v253
      %v262 = vcombine.high %v256, %v256
      %v265 = vld [vmem:[%s2] sm:$0xf]
      %v266 = vadd.f32 %v253, %v265
      %v267 = vadd.f32 %v261, %v265
      %v268 = vadd.f32 %v256, %v265
      %v269 = vadd.f32 %v262, %v265
      %v274 = vcombine.low %v266, %v267
      %v275 = vcombine.low %v268, %v269
      %v278 = vpack.c.bf16 %v275, %v274
      %v280 = vunpack.c.l.b16 %v278
      %v281 = vunpack.c.h.b16 %v278
      %v282 = vpack.c.b16 %v280, %v280
      %v283 = vpack.c.b16 %v281, %v281
      %286 = vst [vmem:[%s172] sm:$0xf] %v282
      %287 = vst [vmem:[%s172 + $0x4] sm:$0xf] %v283
      %s288 = smul.u32 2, %s14
      %p289 = scmp.lt.s32.totalorder %s288, 3
      %s290 = scalar_select %p289, %s288, 3
      %s291 = smul.addr %s290, 4
      %s292 = scalar_lea.vmem %s3, %s291
      // Predicated region
      $region33: #{patch_embedding_forward.1} parent=31 // pred_check
        %p293 = pneg %p100
      $region34: #{patch_embedding_forward.1} parent=31 // pred_check_branch
        %295 = sbr.rel (%p293) target = $region36
      $region35: #{patch_embedding_forward.1} parent=31 // pred_region
        %s296 = smul.u32 2, %s14
      $region36: #{patch_embedding_forward.1} parent=31 // pred_fallthru
        _
    $region32: #{patch_embedding_forward.1} parent=5 // pred_fallthru
      _
    %p297 = scmp.le.s32.totalorder 2, %s9
    // Predicated region
    $region37: #{patch_embedding_forward.1} parent=5 // pred_check
      %p298 = pneg %p297
    $region38: #{patch_embedding_forward.1} parent=5 // pred_check_branch
      %300 = sbr.rel (%p298) target = $region40
    $region39: #{patch_embedding_forward.1} parent=5 // pred_region
      %s301 = ssub.s32 %s9, 2
      // Predicated region
      $region41: #{patch_embedding_forward.1} parent=39 // pred_check
        %p302 = pneg %p106
      $region42: #{patch_embedding_forward.1} parent=39 // pred_check_branch
        %304 = sbr.rel (%p302) target = $region44
      $region43: #{patch_embedding_forward.1} parent=39 // pred_region
        %s305 = smul.u32 2, %s15
        %p306 = scmp.lt.s32.totalorder %s305, 3
        %s307 = scalar_select %p306, %s305, 3
        %s308 = smul.addr %s307, 4
        %s309 = scalar_lea.vmem %s3, %s308
      $region44: #{patch_embedding_forward.1} parent=39 // pred_fallthru
        _
    $region40: #{patch_embedding_forward.1} parent=5 // pred_fallthru
      _
  $region6: #{patch_embedding_forward.1} parent=0 // loop_footer
    %s13 = sadd.s32 1, %s9
  $region7: #{patch_embedding_forward.1} parent=0 // loop_footer_branch
    %8 = sbr.rel target = $region3
  $region8: #{patch_embedding_forward.1} parent=0 // loop_exit
    _

</llo_original>
